<compile_context>
chip_gen: v6e
topology: v6e:2x2x1
jax: 0.10.0
libtpu: 0.0.40
codegen_flags: <defaults>
</compile_context>

<pallas_src>
from functools import partial
import math

import numpy as np
import jax
import jax.numpy as jnp
from jax.experimental import pallas as pl
from jax.experimental.pallas import tpu as pltpu


def _round_up(x, m):
    return (x + m - 1) // m * m


def _pick_block_n(n, block_n_max):
    """Largest divisor of n that is <= block_n_max, preferring a choice that
    leaves >= 2 grid steps (so both v7x TensorCores get work)."""
    divs = [d for d in range(1, min(n, block_n_max) + 1) if n % d == 0]
    for d in reversed(divs):
        if n // d >= 2:
            return d
    return divs[-1]


def _conv2d_kernel(x_ref, w_ref, mask_ref, scale_ref, shift_ref, o_ref,
                   xbuf_ref, slab_ref, *, bt, cin, hw, kh, kw, w,
                   img_off, tap_base, pcols, tap_full):
    """One grid step = `bt` batch images.

    x_ref:     (bt, Cin, H*W)         flattened NCHW images (input dtype)
    w_ref:     (Cout, KH*KW*Cin)      im2col weight matrix (compute dtype)
    mask_ref:  (KH*KW, PCOLS)         per-tap border masks (compute dtype 0/1)
    scale_ref: (Cout, 1) f32          per-channel scale (folded eval-mode BN)
    shift_ref: (Cout, 1) f32          per-channel shift (bias / folded BN)
    o_ref:     (bt, Cout, PCOLS)      lane-dense, channel-major output
    xbuf_ref:  (bt, Cin, BUFLEN)      flat image scratch (compute dtype)
    slab_ref:  (KH*KW*Cin, bt*PCOLS)  im2col slab scratch (compute dtype)
    """
    cdtype = xbuf_ref.dtype

    # Ingest: one dense, full-width copy per image (no per-row padding copies,
    # no scratch zeroing).  Also performs the compute-dtype cast exactly once.
    for bi in range(bt):
        xbuf_ref[bi, :, img_off:img_off + hw] = x_ref[bi].astype(cdtype)

    # im2col: on the flat (pitch-W) image every kernel tap is a static,
    # contiguous lane slice.  Border taps are zeroed with a precomputed mask
    # via jnp.where (select), so garbage in the unwritten scratch margins can
    # never reach a valid output.  Interior taps skip the select entirely.
    zero = jnp.zeros((), cdtype)
    for i in range(kh):
        for j in range(kw):
            t = i * kw + j
            src = tap_base + i * w + j
            if not tap_full[t]:
                m = mask_ref[t:t + 1, :] != 0          # (1, PCOLS) -> bcast Cin
            for bi in range(bt):
                vals = xbuf_ref[bi, :, src:src + pcols]
                if not tap_full[t]:
                    vals = jnp.where(m, vals, zero)
                slab_ref[t * cin:(t + 1) * cin,
                         bi * pcols:(bi + 1) * pcols] = vals

    # ONE MXU matmul for the whole batch tile, f32 accumulation.  scale/shift
    # (identity for bias=False, batchnorm=False) applied once on the result.
    acc = jnp.dot(w_ref[...], slab_ref[...], preferred_element_type=jnp.float32)
    y = acc * scale_ref[...] + shift_ref[...]

    # Lane-dense (multiple-of-128) stores; result is already NCHW-ordered, so
    # the wrapper needs no transpose.
    for bi in range(bt):
        o_ref[bi] = y[:, bi * pcols:(bi + 1) * pcols].astype(o_ref.dtype)


def conv2d_pallas(x_nchw, weight_oihw, *, stride=1, padding=0,
                  scale=None, shift=None, compute_dtype=jnp.bfloat16,
                  block_n=8):
    """Equivalent of Conv_2d.forward.

    scale/shift fold an optional bias and eval-mode BatchNorm2d; scale=None,
    shift=None (the module default bias=False, batchnorm=False) is the identity.
    # TODO(synk): training-mode BatchNorm2d (batch statistics) is not
    # implemented; batchnorm is supported only as eval-mode scale/shift folding.
    """
    n, cin, h, w = x_nchw.shape
    cout, cin_w, kh, kw = weight_oihw.shape
    assert cin == cin_w
    ho = (h + 2 * padding - kh) // stride + 1
    wo = (w + 2 * padding - kw) // stride + 1
    assert ho >= 1 and wo >= 1
    # Column constraint of the pitch-W flattened-output scheme.
    # TODO(synk): padding > (kernel_size-1)//2 ("full"-style conv) unsupported.
    assert 2 * padding <= kw - 1, "padding > (kernel_size-1)//2 not supported"

    hw = h * w
    nrows = (ho - 1) * stride + 1              # dense output rows computed
    pcols = _round_up(nrows * w, 128)          # lane-dense width per image
    img_off = _round_up(padding * (w + 1), 128)  # lane-aligned image offset
    tap_base = img_off - padding * (w + 1)     # => tap (i,j) slice starts >= 0
    delta_max = (kh - 1 - padding) * w + (kw - 1 - padding)
    buflen = _round_up(max(img_off + hw,
                           img_off + max(delta_max, 0) + pcols), 128)

    bt = _pick_block_n(n, block_n)             # images per grid step
    assert n % bt == 0

    # Per-tap border masks (trace-time constants): 1 where the tap samples a
    # real input element, 0 where the conv's zero-padding (or the lane-padding
    # tail) applies.  q indexes the dense (nrows x W) output grid, flattened.
    q = np.arange(pcols)
    r, c = q // w, q % w
    masks = np.zeros((kh * kw, pcols), np.float32)
    for i in range(kh):
        for j in range(kw):
            ri, ci = r + i - padding, c + j - padding
            masks[i * kw + j] = ((r < nrows) & (ri >= 0) & (ri < h)
                                 & (ci >= 0) & (ci < w))
    tap_full = tuple(bool(np.all(masks[t] == 1.0)) for t in range(kh * kw))
    masks_j = jnp.asarray(masks, compute_dtype)

    # Layout-only glue (tiny): weights OIHW -> (Cout, KH*KW*Cin) im2col matrix;
    # x flattened to (N, Cin, H*W) -- a pure reshape, no pad, no transpose.
    w2 = jnp.transpose(weight_oihw, (0, 2, 3, 1)).reshape(cout, kh * kw * cin)
    w2 = w2.astype(compute_dtype)
    x_flat = x_nchw.reshape(n, cin, hw)

    scale = (jnp.ones((cout, 1), jnp.float32) if scale is None
             else scale.reshape(cout, 1).astype(jnp.float32))
    shift = (jnp.zeros((cout, 1), jnp.float32) if shift is None
             else shift.reshape(cout, 1).astype(jnp.float32))

    kernel = partial(_conv2d_kernel, bt=bt, cin=cin, hw=hw, kh=kh, kw=kw, w=w,
                     img_off=img_off, tap_base=tap_base, pcols=pcols,
                     tap_full=tap_full)

    # VMEM budget (double-buffered in/out blocks + scratch); only raise the
    # scoped limit when actually needed, capped below v7x's 64 MiB physical.
    esize = np.dtype(compute_dtype).itemsize
    xsize = x_nchw.dtype.itemsize
    vmem_bytes = (2 * bt * cin * hw * xsize
                  + 2 * bt * cout * pcols * xsize
                  + bt * cin * buflen * esize
                  + kh * kw * cin * bt * pcols * esize)
    compiler_kwargs = dict(dimension_semantics=("parallel",))
    if vmem_bytes > 30 * 1024 * 1024:
        compiler_kwargs["vmem_limit_bytes"] = int(
            min(vmem_bytes * 1.25, 60 * 1024 * 1024))

    out_flat = pl.pallas_call(
        kernel,
        out_shape=jax.ShapeDtypeStruct((n, cout, pcols), x_nchw.dtype),
        grid_spec=pltpu.PrefetchScalarGridSpec(
            num_scalar_prefetch=0,
            grid=(n // bt,),
            in_specs=[
                pl.BlockSpec((bt, cin, hw), lambda g: (g, 0, 0)),
                pl.BlockSpec((cout, kh * kw * cin), lambda g: (0, 0)),
                pl.BlockSpec((kh * kw, pcols), lambda g: (0, 0)),
                pl.BlockSpec((cout, 1), lambda g: (0, 0)),
                pl.BlockSpec((cout, 1), lambda g: (0, 0)),
            ],
            out_specs=pl.BlockSpec((bt, cout, pcols), lambda g: (g, 0, 0)),
            scratch_shapes=[
                pltpu.VMEM((bt, cin, buflen), compute_dtype),
                pltpu.VMEM((kh * kw * cin, bt * pcols), compute_dtype),
            ],
        ),
        compiler_params=pltpu.CompilerParams(**compiler_kwargs),
    )(x_flat, w2, masks_j, scale, shift)

    # Valid-output extraction: free for the module default (stride=1, "same"
    # geometry => pcols == Ho*W == H*W); a tiny strided slice otherwise.
    out = out_flat[:, :, :nrows * w].reshape(n, cout, nrows, w)
    return out[:, :, ::stride, 0:(wo - 1) * stride + 1:stride]


if __name__ == "__main__":
    root = jax.random.PRNGKey(0)

    def ref_conv(x, wgt, stride, padding):
        return jax.lax.conv_general_dilated(
            x, wgt, window_strides=(stride, stride),
            padding=[(padding, padding), (padding, padding)],
            dimension_numbers=("NCHW", "OIHW", "NCHW"))

    def run_case(idx, n, cin, h, w, cout, k, stride, padding):
        kx, kwt = jax.random.split(jax.random.fold_in(root, idx))
        x = jax.random.normal(kx, (n, cin, h, w), jnp.float32)
        fan_in = cin * k * k
        bound = 1.0 / math.sqrt(fan_in)
        wgt = jax.random.uniform(kwt, (cout, cin, k, k), jnp.float32,
                                 minval=-bound, maxval=bound)

        ref_f32 = ref_conv(x, wgt, stride, padding)

        # f32-operand path for a tight check against XLA's conv.
        out_f32 = jax.block_until_ready(
            conv2d_pallas(x, wgt, stride=stride, padding=padding,
                          compute_dtype=jnp.float32))
        assert out_f32.shape == ref_f32.shape, (out_f32.shape, ref_f32.shape)
        err = float(jnp.max(jnp.abs(out_f32 - ref_f32)))
        assert jnp.allclose(out_f32, ref_f32, atol=1e-4, rtol=1e-4), \
            f"f32 max_err={err}"

        # bf16-operand path (MXU-native), f32 accumulation.
        out_bf16 = jax.block_until_ready(
            conv2d_pallas(x, wgt, stride=stride, padding=padding,
                          compute_dtype=jnp.bfloat16))
        ref_bf16 = ref_conv(x.astype(jnp.bfloat16).astype(jnp.float32),
                            wgt.astype(jnp.bfloat16).astype(jnp.float32),
                            stride, padding)
        err = float(jnp.max(jnp.abs(out_bf16 - ref_bf16)))
        assert jnp.allclose(out_bf16, ref_bf16, atol=5e-3, rtol=1e-2), \
            f"bf16 max_err={err}"

    # Module default shapes: Conv_2d(4, 8, 3, stride=1, padding=1, bias=False)
    run_case(0, n=2, cin=4, h=16, w=16, cout=8, k=3, stride=1, padding=1)
    # Batched path: 8 images per grid step, 2 grid steps.
    run_case(1, n=16, cin=4, h=16, w=16, cout=8, k=3, stride=1, padding=1)
    # stride=2 / padding=0 path.
    run_case(2, n=4, cin=4, h=16, w=16, cout=8, k=3, stride=2, padding=0)

    print("KERNEL_OK")
</pallas_src>

<mosaic_0001>
module attributes {stable_mosaic.version = 11 : i64} {
  func.func @_conv2d_kernel(%arg0: i32, %arg1: memref<1x4x256xf32, #tpu.memory_space<vmem>>, %arg2: memref<8x36xf32, #tpu.memory_space<vmem>>, %arg3: memref<9x256xf32, #tpu.memory_space<vmem>>, %arg4: memref<8x1xf32, #tpu.memory_space<vmem>>, %arg5: memref<8x1xf32, #tpu.memory_space<vmem>>, %arg6: memref<1x8x256xf32, #tpu.memory_space<vmem>>, %arg7: memref<1x4x512xf32, #tpu.memory_space<vmem>>, %arg8: memref<36x256xf32, #tpu.memory_space<vmem>>) attributes {dimension_semantics = [#tpu.dimension_semantics<parallel>], iteration_bounds = array<i64: 2>, scalar_prefetch = 0 : i64, scratch_operands = 2 : i64, tpu.core_type = #tpu.core_type<tc>, window_params = [{transform_indices = @transform_0, window_bounds = array<i64: 1, 4, 256>}, {pipeline_mode = #tpu.pipeline_mode<synchronous>, transform_indices = @transform_1, window_bounds = array<i64: 8, 36>}, {pipeline_mode = #tpu.pipeline_mode<synchronous>, transform_indices = @transform_2, window_bounds = array<i64: 9, 256>}, {pipeline_mode = #tpu.pipeline_mode<synchronous>, transform_indices = @transform_3, window_bounds = array<i64: 8, 1>}, {pipeline_mode = #tpu.pipeline_mode<synchronous>, transform_indices = @transform_4, window_bounds = array<i64: 8, 1>}, {transform_indices = @transform_5, window_bounds = array<i64: 1, 8, 256>}]} {
    %c0 = arith.constant 0 : index
    %c0_0 = arith.constant 0 : index
    %c0_1 = arith.constant 0 : index
    %0 = vector.load %arg1[%c0, %c0_0, %c0_1] : memref<1x4x256xf32, #tpu.memory_space<vmem>>, vector<1x4x256xf32>
    %1 = vector.shape_cast %0 : vector<1x4x256xf32> to vector<4x256xf32>
    %c0_2 = arith.constant 0 : index
    %c0_3 = arith.constant 0 : index
    %c128 = arith.constant 128 : index
    %2 = vector.load %arg7[%c0_2, %c0_3, %c128] : memref<1x4x512xf32, #tpu.memory_space<vmem>>, vector<1x4x256xf32>
    %3 = vector.shape_cast %2 : vector<1x4x256xf32> to vector<4x256xf32>
    %4 = vector.shape_cast %1 : vector<4x256xf32> to vector<1x4x256xf32>
    tpu.vector_store %arg7[%c0_2, %c0_3, %c128], %4 {strides = array<i32>} : memref<1x4x512xf32, #tpu.memory_space<vmem>>, vector<1x4x256xf32>,
    %c0_4 = arith.constant 0 : index
    %c0_5 = arith.constant 0 : index
    %5 = vector.load %arg3[%c0_4, %c0_5] : memref<9x256xf32, #tpu.memory_space<vmem>>, vector<1x256xf32>
    %cst = arith.constant 0.000000e+00 : f32
    %6 = vector.broadcast %cst : f32 to vector<1x256xf32>
    %7 = arith.cmpf one, %5, %6 : vector<1x256xf32>
    %c0_6 = arith.constant 0 : index
    %c0_7 = arith.constant 0 : index
    %c111 = arith.constant 111 : index
    %8 = vector.load %arg7[%c0_6, %c0_7, %c111] : memref<1x4x512xf32, #tpu.memory_space<vmem>>, vector<1x4x256xf32>
    %9 = vector.shape_cast %8 : vector<1x4x256xf32> to vector<4x256xf32>
    %cst_8 = arith.constant 0.000000e+00 : f32
    %10 = vector.shape_cast %7 : vector<1x256xi1> to vector<1x256xi1>
    %11 = vector.broadcast %10 : vector<1x256xi1> to vector<4x256xi1>
    %12 = vector.broadcast %cst_8 : f32 to vector<4x256xf32>
    %13 = arith.select %11, %9, %12 : vector<4x256xi1>, vector<4x256xf32>
    %c0_9 = arith.constant 0 : index
    %c0_10 = arith.constant 0 : index
    %14 = vector.load %arg8[%c0_9, %c0_10] : memref<36x256xf32, #tpu.memory_space<vmem>>, vector<4x256xf32>
    tpu.vector_store %arg8[%c0_9, %c0_10], %13 {strides = array<i32>} : memref<36x256xf32, #tpu.memory_space<vmem>>, vector<4x256xf32>,
    %c1 = arith.constant 1 : index
    %c0_11 = arith.constant 0 : index
    %15 = vector.load %arg3[%c1, %c0_11] : memref<9x256xf32, #tpu.memory_space<vmem>>, vector<1x256xf32>
    %cst_12 = arith.constant 0.000000e+00 : f32
    %16 = vector.broadcast %cst_12 : f32 to vector<1x256xf32>
    %17 = arith.cmpf one, %15, %16 : vector<1x256xf32>
    %c0_13 = arith.constant 0 : index
    %c0_14 = arith.constant 0 : index
    %c112 = arith.constant 112 : index
    %18 = vector.load %arg7[%c0_13, %c0_14, %c112] : memref<1x4x512xf32, #tpu.memory_space<vmem>>, vector<1x4x256xf32>
    %19 = vector.shape_cast %18 : vector<1x4x256xf32> to vector<4x256xf32>
    %cst_15 = arith.constant 0.000000e+00 : f32
    %20 = vector.shape_cast %17 : vector<1x256xi1> to vector<1x256xi1>
    %21 = vector.broadcast %20 : vector<1x256xi1> to vector<4x256xi1>
    %22 = vector.broadcast %cst_15 : f32 to vector<4x256xf32>
    %23 = arith.select %21, %19, %22 : vector<4x256xi1>, vector<4x256xf32>
    %c4 = arith.constant 4 : index
    %c0_16 = arith.constant 0 : index
    %24 = vector.load %arg8[%c4, %c0_16] : memref<36x256xf32, #tpu.memory_space<vmem>>, vector<4x256xf32>
    tpu.vector_store %arg8[%c4, %c0_16], %23 {strides = array<i32>} : memref<36x256xf32, #tpu.memory_space<vmem>>, vector<4x256xf32>,
    %c2 = arith.constant 2 : index
    %c0_17 = arith.constant 0 : index
    %25 = vector.load %arg3[%c2, %c0_17] : memref<9x256xf32, #tpu.memory_space<vmem>>, vector<1x256xf32>
    %cst_18 = arith.constant 0.000000e+00 : f32
    %26 = vector.broadcast %cst_18 : f32 to vector<1x256xf32>
    %27 = arith.cmpf one, %25, %26 : vector<1x256xf32>
    %c0_19 = arith.constant 0 : index
    %c0_20 = arith.constant 0 : index
    %c113 = arith.constant 113 : index
    %28 = vector.load %arg7[%c0_19, %c0_20, %c113] : memref<1x4x512xf32, #tpu.memory_space<vmem>>, vector<1x4x256xf32>
    %29 = vector.shape_cast %28 : vector<1x4x256xf32> to vector<4x256xf32>
    %cst_21 = arith.constant 0.000000e+00 : f32
    %30 = vector.shape_cast %27 : vector<1x256xi1> to vector<1x256xi1>
    %31 = vector.broadcast %30 : vector<1x256xi1> to vector<4x256xi1>
    %32 = vector.broadcast %cst_21 : f32 to vector<4x256xf32>
    %33 = arith.select %31, %29, %32 : vector<4x256xi1>, vector<4x256xf32>
    %c8 = arith.constant 8 : index
    %c0_22 = arith.constant 0 : index
    %34 = vector.load %arg8[%c8, %c0_22] : memref<36x256xf32, #tpu.memory_space<vmem>>, vector<4x256xf32>
    tpu.vector_store %arg8[%c8, %c0_22], %33 {strides = array<i32>} : memref<36x256xf32, #tpu.memory_space<vmem>>, vector<4x256xf32>,
    %c3 = arith.constant 3 : index
    %c0_23 = arith.constant 0 : index
    %35 = vector.load %arg3[%c3, %c0_23] : memref<9x256xf32, #tpu.memory_space<vmem>>, vector<1x256xf32>
    %cst_24 = arith.constant 0.000000e+00 : f32
    %36 = vector.broadcast %cst_24 : f32 to vector<1x256xf32>
    %37 = arith.cmpf one, %35, %36 : vector<1x256xf32>
    %c0_25 = arith.constant 0 : index
    %c0_26 = arith.constant 0 : index
    %c127 = arith.constant 127 : index
    %38 = vector.load %arg7[%c0_25, %c0_26, %c127] : memref<1x4x512xf32, #tpu.memory_space<vmem>>, vector<1x4x256xf32>
    %39 = vector.shape_cast %38 : vector<1x4x256xf32> to vector<4x256xf32>
    %cst_27 = arith.constant 0.000000e+00 : f32
    %40 = vector.shape_cast %37 : vector<1x256xi1> to vector<1x256xi1>
    %41 = vector.broadcast %40 : vector<1x256xi1> to vector<4x256xi1>
    %42 = vector.broadcast %cst_27 : f32 to vector<4x256xf32>
    %43 = arith.select %41, %39, %42 : vector<4x256xi1>, vector<4x256xf32>
    %c12 = arith.constant 12 : index
    %c0_28 = arith.constant 0 : index
    %44 = vector.load %arg8[%c12, %c0_28] : memref<36x256xf32, #tpu.memory_space<vmem>>, vector<4x256xf32>
    tpu.vector_store %arg8[%c12, %c0_28], %43 {strides = array<i32>} : memref<36x256xf32, #tpu.memory_space<vmem>>, vector<4x256xf32>,
    %c0_29 = arith.constant 0 : index
    %c0_30 = arith.constant 0 : index
    %c128_31 = arith.constant 128 : index
    %45 = vector.load %arg7[%c0_29, %c0_30, %c128_31] : memref<1x4x512xf32, #tpu.memory_space<vmem>>, vector<1x4x256xf32>
    %46 = vector.shape_cast %45 : vector<1x4x256xf32> to vector<4x256xf32>
    %c16 = arith.constant 16 : index
    %c0_32 = arith.constant 0 : index
    %47 = vector.load %arg8[%c16, %c0_32] : memref<36x256xf32, #tpu.memory_space<vmem>>, vector<4x256xf32>
    tpu.vector_store %arg8[%c16, %c0_32], %46 {strides = array<i32>} : memref<36x256xf32, #tpu.memory_space<vmem>>, vector<4x256xf32>,
    %c5 = arith.constant 5 : index
    %c0_33 = arith.constant 0 : index
    %48 = vector.load %arg3[%c5, %c0_33] : memref<9x256xf32, #tpu.memory_space<vmem>>, vector<1x256xf32>
    %cst_34 = arith.constant 0.000000e+00 : f32
    %49 = vector.broadcast %cst_34 : f32 to vector<1x256xf32>
    %50 = arith.cmpf one, %48, %49 : vector<1x256xf32>
    %c0_35 = arith.constant 0 : index
    %c0_36 = arith.constant 0 : index
    %c129 = arith.constant 129 : index
    %51 = vector.load %arg7[%c0_35, %c0_36, %c129] : memref<1x4x512xf32, #tpu.memory_space<vmem>>, vector<1x4x256xf32>
    %52 = vector.shape_cast %51 : vector<1x4x256xf32> to vector<4x256xf32>
    %cst_37 = arith.constant 0.000000e+00 : f32
    %53 = vector.shape_cast %50 : vector<1x256xi1> to vector<1x256xi1>
    %54 = vector.broadcast %53 : vector<1x256xi1> to vector<4x256xi1>
    %55 = vector.broadcast %cst_37 : f32 to vector<4x256xf32>
    %56 = arith.select %54, %52, %55 : vector<4x256xi1>, vector<4x256xf32>
    %c20 = arith.constant 20 : index
    %c0_38 = arith.constant 0 : index
    %57 = vector.load %arg8[%c20, %c0_38] : memref<36x256xf32, #tpu.memory_space<vmem>>, vector<4x256xf32>
    tpu.vector_store %arg8[%c20, %c0_38], %56 {strides = array<i32>} : memref<36x256xf32, #tpu.memory_space<vmem>>, vector<4x256xf32>,
    %c6 = arith.constant 6 : index
    %c0_39 = arith.constant 0 : index
    %58 = vector.load %arg3[%c6, %c0_39] : memref<9x256xf32, #tpu.memory_space<vmem>>, vector<1x256xf32>
    %cst_40 = arith.constant 0.000000e+00 : f32
    %59 = vector.broadcast %cst_40 : f32 to vector<1x256xf32>
    %60 = arith.cmpf one, %58, %59 : vector<1x256xf32>
    %c0_41 = arith.constant 0 : index
    %c0_42 = arith.constant 0 : index
    %c143 = arith.constant 143 : index
    %61 = vector.load %arg7[%c0_41, %c0_42, %c143] : memref<1x4x512xf32, #tpu.memory_space<vmem>>, vector<1x4x256xf32>
    %62 = vector.shape_cast %61 : vector<1x4x256xf32> to vector<4x256xf32>
    %cst_43 = arith.constant 0.000000e+00 : f32
    %63 = vector.shape_cast %60 : vector<1x256xi1> to vector<1x256xi1>
    %64 = vector.broadcast %63 : vector<1x256xi1> to vector<4x256xi1>
    %65 = vector.broadcast %cst_43 : f32 to vector<4x256xf32>
    %66 = arith.select %64, %62, %65 : vector<4x256xi1>, vector<4x256xf32>
    %c24 = arith.constant 24 : index
    %c0_44 = arith.constant 0 : index
    %67 = vector.load %arg8[%c24, %c0_44] : memref<36x256xf32, #tpu.memory_space<vmem>>, vector<4x256xf32>
    tpu.vector_store %arg8[%c24, %c0_44], %66 {strides = array<i32>} : memref<36x256xf32, #tpu.memory_space<vmem>>, vector<4x256xf32>,
    %c7 = arith.constant 7 : index
    %c0_45 = arith.constant 0 : index
    %68 = vector.load %arg3[%c7, %c0_45] : memref<9x256xf32, #tpu.memory_space<vmem>>, vector<1x256xf32>
    %cst_46 = arith.constant 0.000000e+00 : f32
    %69 = vector.broadcast %cst_46 : f32 to vector<1x256xf32>
    %70 = arith.cmpf one, %68, %69 : vector<1x256xf32>
    %c0_47 = arith.constant 0 : index
    %c0_48 = arith.constant 0 : index
    %c144 = arith.constant 144 : index
    %71 = vector.load %arg7[%c0_47, %c0_48, %c144] : memref<1x4x512xf32, #tpu.memory_space<vmem>>, vector<1x4x256xf32>
    %72 = vector.shape_cast %71 : vector<1x4x256xf32> to vector<4x256xf32>
    %cst_49 = arith.constant 0.000000e+00 : f32
    %73 = vector.shape_cast %70 : vector<1x256xi1> to vector<1x256xi1>
    %74 = vector.broadcast %73 : vector<1x256xi1> to vector<4x256xi1>
    %75 = vector.broadcast %cst_49 : f32 to vector<4x256xf32>
    %76 = arith.select %74, %72, %75 : vector<4x256xi1>, vector<4x256xf32>
    %c28 = arith.constant 28 : index
    %c0_50 = arith.constant 0 : index
    %77 = vector.load %arg8[%c28, %c0_50] : memref<36x256xf32, #tpu.memory_space<vmem>>, vector<4x256xf32>
    tpu.vector_store %arg8[%c28, %c0_50], %76 {strides = array<i32>} : memref<36x256xf32, #tpu.memory_space<vmem>>, vector<4x256xf32>,
    %c8_51 = arith.constant 8 : index
    %c0_52 = arith.constant 0 : index
    %78 = vector.load %arg3[%c8_51, %c0_52] : memref<9x256xf32, #tpu.memory_space<vmem>>, vector<1x256xf32>
    %cst_53 = arith.constant 0.000000e+00 : f32
    %79 = vector.broadcast %cst_53 : f32 to vector<1x256xf32>
    %80 = arith.cmpf one, %78, %79 : vector<1x256xf32>
    %c0_54 = arith.constant 0 : index
    %c0_55 = arith.constant 0 : index
    %c145 = arith.constant 145 : index
    %81 = vector.load %arg7[%c0_54, %c0_55, %c145] : memref<1x4x512xf32, #tpu.memory_space<vmem>>, vector<1x4x256xf32>
    %82 = vector.shape_cast %81 : vector<1x4x256xf32> to vector<4x256xf32>
    %cst_56 = arith.constant 0.000000e+00 : f32
    %83 = vector.shape_cast %80 : vector<1x256xi1> to vector<1x256xi1>
    %84 = vector.broadcast %83 : vector<1x256xi1> to vector<4x256xi1>
    %85 = vector.broadcast %cst_56 : f32 to vector<4x256xf32>
    %86 = arith.select %84, %82, %85 : vector<4x256xi1>, vector<4x256xf32>
    %c32 = arith.constant 32 : index
    %c0_57 = arith.constant 0 : index
    %87 = vector.load %arg8[%c32, %c0_57] : memref<36x256xf32, #tpu.memory_space<vmem>>, vector<4x256xf32>
    tpu.vector_store %arg8[%c32, %c0_57], %86 {strides = array<i32>} : memref<36x256xf32, #tpu.memory_space<vmem>>, vector<4x256xf32>,
    %c0_58 = arith.constant 0 : index
    %c0_59 = arith.constant 0 : index
    %88 = vector.load %arg2[%c0_58, %c0_59] : memref<8x36xf32, #tpu.memory_space<vmem>>, vector<8x36xf32>
    %c0_60 = arith.constant 0 : index
    %c0_61 = arith.constant 0 : index
    %89 = vector.load %arg8[%c0_60, %c0_61] : memref<36x256xf32, #tpu.memory_space<vmem>>, vector<36x256xf32>
    %cst_62 = arith.constant dense<0.000000e+00> : vector<8x256xf32>
    %90 = tpu.matmul %88, %89, %cst_62 {dimension_numbers = #tpu.dot_dimension_numbers<[1], [0], [0], [1], [0, 0, 1, 1], [], []>} : vector<8x36xf32>, vector<36x256xf32>, vector<8x256xf32> -> vector<8x256xf32>
    %c0_63 = arith.constant 0 : index
    %c0_64 = arith.constant 0 : index
    %91 = vector.load %arg4[%c0_63, %c0_64] : memref<8x1xf32, #tpu.memory_space<vmem>>, vector<8x1xf32>
    %92 = vector.broadcast %91 : vector<8x1xf32> to vector<8x256xf32>
    %93 = arith.mulf %90, %92 : vector<8x256xf32>
    %c0_65 = arith.constant 0 : index
    %c0_66 = arith.constant 0 : index
    %94 = vector.load %arg5[%c0_65, %c0_66] : memref<8x1xf32, #tpu.memory_space<vmem>>, vector<8x1xf32>
    %95 = vector.broadcast %94 : vector<8x1xf32> to vector<8x256xf32>
    %96 = arith.addf %93, %95 : vector<8x256xf32>
    %c0_67 = arith.constant 0 : index
    %c0_68 = arith.constant 0 : index
    %c0_69 = arith.constant 0 : index
    %97 = vector.load %arg6[%c0_67, %c0_68, %c0_69] : memref<1x8x256xf32, #tpu.memory_space<vmem>>, vector<1x8x256xf32>
    %98 = vector.shape_cast %97 : vector<1x8x256xf32> to vector<8x256xf32>
    %99 = vector.shape_cast %96 : vector<8x256xf32> to vector<1x8x256xf32>
    tpu.vector_store %arg6[%c0_67, %c0_68, %c0_69], %99 {strides = array<i32>} : memref<1x8x256xf32, #tpu.memory_space<vmem>>, vector<1x8x256xf32>,
    return
  }
  func.func @transform_0(%arg0: i32) -> (i32, i32, i32) {
    %c0_i32 = arith.constant 0 : i32
    %c0_i32_0 = arith.constant 0 : i32
    %c0_i32_1 = arith.constant 0 : i32
    return %arg0, %c0_i32, %c0_i32_0 : i32, i32, i32
  }
  func.func @transform_1(%arg0: i32) -> (i32, i32) {
    %c0_i32 = arith.constant 0 : i32
    %c0_i32_0 = arith.constant 0 : i32
    %c0_i32_1 = arith.constant 0 : i32
    return %c0_i32, %c0_i32_0 : i32, i32
  }
  func.func @transform_2(%arg0: i32) -> (i32, i32) {
    %c0_i32 = arith.constant 0 : i32
    %c0_i32_0 = arith.constant 0 : i32
    %c0_i32_1 = arith.constant 0 : i32
    return %c0_i32, %c0_i32_0 : i32, i32
  }
  func.func @transform_3(%arg0: i32) -> (i32, i32) {
    %c0_i32 = arith.constant 0 : i32
    %c0_i32_0 = arith.constant 0 : i32
    %c0_i32_1 = arith.constant 0 : i32
    return %c0_i32, %c0_i32_0 : i32, i32
  }
  func.func @transform_4(%arg0: i32) -> (i32, i32) {
    %c0_i32 = arith.constant 0 : i32
    %c0_i32_0 = arith.constant 0 : i32
    %c0_i32_1 = arith.constant 0 : i32
    return %c0_i32, %c0_i32_0 : i32, i32
  }
  func.func @transform_5(%arg0: i32) -> (i32, i32, i32) {
    %c0_i32 = arith.constant 0 : i32
    %c0_i32_0 = arith.constant 0 : i32
    %c0_i32_1 = arith.constant 0 : i32
    return %arg0, %c0_i32, %c0_i32_0 : i32, i32, i32
  }
}

</mosaic_0001>

<llo_original>
// kernel: tpu_custom_call.1
$region0: #{tpu_custom_call.1}
  #allocation0 [shape = 'u32[]', space=smem, size = 0x4, offset = 0x4, fixed_abs, tag = 'smem constant byte address 0x4 - core index']
  #allocation1 [shape = 'u32[144,128]{1,0:T(1,128)}', space=vmem, size = 0x12000, scoped, tag = 'internal scratch']
  #allocation2 [shape = 'f32[1,4,512]{2,1,0:T(4,128)}', space=vmem, size = 0x2000, scoped, tag = 'scratch operand']
  #allocation3 [shape = 'f32[36,256]{1,0:T(8,128)}', space=vmem, size = 0xa000, scoped, tag = 'scratch operand']
  %s0 = inlined_call_operand.vmem [shape: f32[2,4,256], index: 0, kind: input, shape index: {}]
  %s1 = inlined_call_operand.hbm [shape: f32[8,36], index: 1, kind: input, shape index: {}]
  %s2 = inlined_call_operand.hbm [shape: f32[9,256], index: 2, kind: input, shape index: {}]
  %s3 = inlined_call_operand.vmem [shape: f32[8,1], index: 3, kind: input, shape index: {}]
  %s4 = inlined_call_operand.vmem [shape: f32[8,1], index: 4, kind: input, shape index: {}]
  %s5 = inlined_call_operand.hbm [shape: f32[2,8,256], index: 5, kind: output, shape index: {}]
  %s6 = sld [smem:[#allocation0]]
  $region61: #{tpu_custom_call.1} parent=0
    _
  %s8 = ssub.s32 1, %s6
  %s9 = scalar_select 0, %s8, %s6
  $region1: #{tpu_custom_call.1} parent=0
    #allocation4 [shape = 'u8[4096]{0}', space=vmem, size = 0x1000, scoped, tag = 'input window, operand 1, single buffered']
    #allocation5 [shape = 's32[2]{0}', space=sflag, size = 0x8, scoped, tag = 'scoped memory for tpu_custom_call.1']
    #allocation6 [shape = 's32[2]{0}', space=sflag, size = 0x8, scoped, tag = 'scoped memory for tpu_custom_call.1']
    #allocation7 [shape = 'u8[16384]{0}', space=vmem, size = 0x4000, scoped, tag = 'input window, operand 2, single buffered']
    #allocation8 [shape = 's32[1]{0}', space=sflag, size = 0x4, scoped, tag = 'scoped memory for tpu_custom_call.1']
    #allocation9 [shape = 'u8[16384]{0}', space=vmem, size = 0x4000, scoped, tag = 'output window, operand 0']
    %10 = vsyncpa [#allocation5], 0
    %11 = vsyncpa [#allocation8], 0
    %12 = vsyncpa [#allocation6], 0
    %s13 = scalar_lea.sflag [#allocation6], 1
    %14 = vsyncpa %s13, 0
    loop: start=0, step=1, limit=4
    $region2: #{tpu_custom_call.1} parent=1 // loop_pre_header
      _
    $region3: #{tpu_custom_call.1} parent=1 // loop_header
      %s16 = sphi 0, %s20
      %p17 = scmp.ge.s32.totalorder %s16, 4
      %s26 = sphi 0, %s28
      %s29 = sphi 0, %s26
      %s30 = sphi 0, %s29
      %s46 = sphi 0, %s30
      %s50 = sphi 0, %s50
      %s52 = sphi 0, %s50
      %s53 = sphi 0, %s52
      %s67 = sphi 0, %s53
      %s71 = sphi 0, %s71
      %s73 = sphi 0, %s71
      %s74 = sphi 0, %s73
      %s88 = sphi 0, %s74
      %s92 = sphi 0, %s92
      %s94 = sphi 0, %s92
      %s95 = sphi 0, %s94
      %s109 = sphi 0, %s95
      %s113 = sphi 0, %s113
      %s115 = sphi 0, %s113
      %s116 = sphi 0, %s115
      %s130 = sphi 0, %s116
      %s136 = sphi 0, %s138
      %s139 = sphi 0, %s136
      %s140 = sphi 0, %s139
      %s156 = sphi 0, %s140
    $region4: #{tpu_custom_call.1} parent=1 // loop_header_branch
      %19 = sbr.rel (%p17) target = $region8
    $region5: #{tpu_custom_call.1} parent=1 // loop_body
      %s21 = ssub.s32 %s16, 1
      %s22 = ssub.s32 %s16, 2
      %s23 = sadd.s32 %s16, 1
      %s24 = ssub.s32 %s16, %s23
      %p25 = scmp.eq.s32.totalorder %s24, 0
      %s27 = sadd.s32 %s26, 1
      %s28 = scalar_select %p25, %s26, %s27
      %p31 = pneg %p25
      %p32 = scmp.eq.s32.totalorder %s16, 1
      %p33 = por %p31, %p32
      %p34 = scmp.ne.s32.totalorder %s26, %s29
      %p35 = scmp.eq.s32.totalorder %s16, 0
      %p36 = por %p34, %p35
      %p37 = scmp.ne.s32.totalorder %s26, %s29
      %p38 = scmp.eq.s32.totalorder %s21, 1
      %p39 = por %p37, %p38
      %p40 = scmp.ne.s32.totalorder %s29, %s30
      %p41 = scmp.eq.s32.totalorder %s21, 0
      %p42 = por %p40, %p41
      %p43 = scmp.ne.s32.totalorder %s29, %s30
      %p44 = scmp.eq.s32.totalorder %s22, 1
      %p45 = por %p43, %p44
      %p47 = scmp.ne.s32.totalorder %s30, %s46
      %p48 = scmp.eq.s32.totalorder %s22, 0
      %p49 = por %p47, %p48
      %s51 = sadd.s32 %s50, 1
      %p54 = scmp.eq.s32.totalorder %s16, 1
      %p55 = scmp.ne.s32.totalorder %s50, %s52
      %p56 = scmp.eq.s32.totalorder %s16, 0
      %p57 = por %p55, %p56
      %p58 = scmp.ne.s32.totalorder %s50, %s52
      %p59 = scmp.eq.s32.totalorder %s21, 1
      %p60 = por %p58, %p59
      %p61 = scmp.ne.s32.totalorder %s52, %s53
      %p62 = scmp.eq.s32.totalorder %s21, 0
      %p63 = por %p61, %p62
      %p64 = scmp.ne.s32.totalorder %s52, %s53
      %p65 = scmp.eq.s32.totalorder %s22, 1
      %p66 = por %p64, %p65
      %p68 = scmp.ne.s32.totalorder %s53, %s67
      %p69 = scmp.eq.s32.totalorder %s22, 0
      %p70 = por %p68, %p69
      %s72 = sadd.s32 %s71, 1
      %p75 = scmp.eq.s32.totalorder %s16, 1
      %p76 = scmp.ne.s32.totalorder %s71, %s73
      %p77 = scmp.eq.s32.totalorder %s16, 0
      %p78 = por %p76, %p77
      %p79 = scmp.ne.s32.totalorder %s71, %s73
      %p80 = scmp.eq.s32.totalorder %s21, 1
      %p81 = por %p79, %p80
      %p82 = scmp.ne.s32.totalorder %s73, %s74
      %p83 = scmp.eq.s32.totalorder %s21, 0
      %p84 = por %p82, %p83
      %p85 = scmp.ne.s32.totalorder %s73, %s74
      %p86 = scmp.eq.s32.totalorder %s22, 1
      %p87 = por %p85, %p86
      %p89 = scmp.ne.s32.totalorder %s74, %s88
      %p90 = scmp.eq.s32.totalorder %s22, 0
      %p91 = por %p89, %p90
      %s93 = sadd.s32 %s92, 1
      %p96 = scmp.eq.s32.totalorder %s16, 1
      %p97 = scmp.ne.s32.totalorder %s92, %s94
      %p98 = scmp.eq.s32.totalorder %s16, 0
      %p99 = por %p97, %p98
      %p100 = scmp.ne.s32.totalorder %s92, %s94
      %p101 = scmp.eq.s32.totalorder %s21, 1
      %p102 = por %p100, %p101
      %p103 = scmp.ne.s32.totalorder %s94, %s95
      %p104 = scmp.eq.s32.totalorder %s21, 0
      %p105 = por %p103, %p104
      %p106 = scmp.ne.s32.totalorder %s94, %s95
      %p107 = scmp.eq.s32.totalorder %s22, 1
      %p108 = por %p106, %p107
      %p110 = scmp.ne.s32.totalorder %s95, %s109
      %p111 = scmp.eq.s32.totalorder %s22, 0
      %p112 = por %p110, %p111
      %s114 = sadd.s32 %s113, 1
      %p117 = scmp.eq.s32.totalorder %s16, 1
      %p118 = scmp.ne.s32.totalorder %s113, %s115
      %p119 = scmp.eq.s32.totalorder %s16, 0
      %p120 = por %p118, %p119
      %p121 = scmp.ne.s32.totalorder %s113, %s115
      %p122 = scmp.eq.s32.totalorder %s21, 1
      %p123 = por %p121, %p122
      %p124 = scmp.ne.s32.totalorder %s115, %s116
      %p125 = scmp.eq.s32.totalorder %s21, 0
      %p126 = por %p124, %p125
      %p127 = scmp.ne.s32.totalorder %s115, %s116
      %p128 = scmp.eq.s32.totalorder %s22, 1
      %p129 = por %p127, %p128
      %p131 = scmp.ne.s32.totalorder %s116, %s130
      %p132 = scmp.eq.s32.totalorder %s22, 0
      %p133 = por %p131, %p132
      %s134 = ssub.s32 %s16, %s23
      %p135 = scmp.eq.s32.totalorder %s134, 0
      %s137 = sadd.s32 %s136, 1
      %s138 = scalar_select %p135, %s136, %s137
      %p141 = pneg %p135
      %p142 = scmp.eq.s32.totalorder %s16, 1
      %p143 = por %p141, %p142
      %p144 = scmp.ne.s32.totalorder %s136, %s139
      %p145 = scmp.eq.s32.totalorder %s16, 0
      %p146 = por %p144, %p145
      %p147 = scmp.ne.s32.totalorder %s136, %s139
      %p148 = scmp.eq.s32.totalorder %s21, 1
      %p149 = por %p147, %p148
      %p150 = scmp.ne.s32.totalorder %s139, %s140
      %p151 = scmp.eq.s32.totalorder %s21, 0
      %p152 = por %p150, %p151
      %p153 = scmp.ne.s32.totalorder %s139, %s140
      %p154 = scmp.eq.s32.totalorder %s22, 1
      %p155 = por %p153, %p154
      %p157 = scmp.ne.s32.totalorder %s140, %s156
      %p158 = scmp.eq.s32.totalorder %s22, 0
      %p159 = por %p157, %p158
      %p160 = scmp.le.s32.totalorder 1, %s16
      %p161 = scmp.lt.s32.totalorder %s16, 3
      %p162 = pnand %p160, %p161
      %p163 = pneg %p162
      // Predicated region
      $region9: #{tpu_custom_call.1} parent=5 // pred_check
        _
      $region10: #{tpu_custom_call.1} parent=5 // pred_check_branch
        %165 = sbr.rel (%p162) target = $region12
      $region11: #{tpu_custom_call.1} parent=5 // pred_region
        %s166 = ssub.s32 %s16, 1
        // Predicated region
        $region13: #{tpu_custom_call.1} parent=11 // pred_check
          %p167 = pneg %p63
        $region14: #{tpu_custom_call.1} parent=11 // pred_check_branch
          %169 = sbr.rel (%p167) target = $region16
        $region15: #{tpu_custom_call.1} parent=11 // pred_region
          %s171 = ssub.s32 128, 128
          %172 = vsyncadd [#allocation5], %s171
          %s174 = sshll.u32 [#allocation4], 4
          %s175 = int_to_ptr.vmem [resolvable:$true] %s174
          %177 = dma.hbm_to_vmem [thread:$0]  %s1, 128, %s175, [#allocation5]
        $region16: #{tpu_custom_call.1} parent=11 // pred_fallthru
          _
        // Predicated region
        $region17: #{tpu_custom_call.1} parent=11 // pred_check
          %p178 = pneg %p84
        $region18: #{tpu_custom_call.1} parent=11 // pred_check_branch
          %180 = sbr.rel (%p178) target = $region20
        $region19: #{tpu_custom_call.1} parent=11 // pred_region
          %s182 = ssub.s32 512, 512
          %183 = vsyncadd [#allocation8], %s182
          %s184 = sshll.u32 [#allocation7], 4
          %s185 = int_to_ptr.vmem [resolvable:$true] %s184
          %190 = dma.hbm_to_vmem [thread:$0]  %s2, 512, %s185, [#allocation8], 256, 256, 16
        $region20: #{tpu_custom_call.1} parent=11 // pred_fallthru
          _
        // Predicated region
        $region21: #{tpu_custom_call.1} parent=11 // pred_check
          %p191 = pneg %p105
        $region22: #{tpu_custom_call.1} parent=11 // pred_check_branch
          %193 = sbr.rel (%p191) target = $region24
        $region23: #{tpu_custom_call.1} parent=11 // pred_region
          _
        $region24: #{tpu_custom_call.1} parent=11 // pred_fallthru
          _
        // Predicated region
        $region25: #{tpu_custom_call.1} parent=11 // pred_check
          %p194 = pneg %p126
        $region26: #{tpu_custom_call.1} parent=11 // pred_check_branch
          %196 = sbr.rel (%p194) target = $region28
        $region27: #{tpu_custom_call.1} parent=11 // pred_region
          _
        $region28: #{tpu_custom_call.1} parent=11 // pred_fallthru
          _
      $region12: #{tpu_custom_call.1} parent=5 // pred_fallthru
        _
      %p197 = scmp.lt.s32.totalorder %s16, 2
      // Predicated region
      $region29: #{tpu_custom_call.1} parent=5 // pred_check
        %p198 = pneg %p197
      $region30: #{tpu_custom_call.1} parent=5 // pred_check_branch
        %200 = sbr.rel (%p198) target = $region32
      $region31: #{tpu_custom_call.1} parent=5 // pred_region
        // Predicated region
        $region33: #{tpu_custom_call.1} parent=31 // pred_check
          %p201 = pneg %p36
        $region34: #{tpu_custom_call.1} parent=31 // pred_check_branch
          %203 = sbr.rel (%p201) target = $region36
        $region35: #{tpu_custom_call.1} parent=31 // pred_region
          %p204 = scmp.lt.s32.totalorder %s16, 1
          %s205 = scalar_select %p204, %s16, 1
          %s206 = smul.addr %s205, 2
          %s207 = smul.addr %s206, 4
          %s208 = scalar_lea.vmem %s0, %s207
        $region36: #{tpu_custom_call.1} parent=31 // pred_fallthru
          _
      $region32: #{tpu_custom_call.1} parent=5 // pred_fallthru
        _
      %p209 = scmp.le.s32.totalorder 1, %s16
      %p210 = scmp.lt.s32.totalorder %s16, 3
      %p211 = pnand %p209, %p210
      %p212 = pneg %p211
      // Predicated region
      $region37: #{tpu_custom_call.1} parent=5 // pred_check
        _
      $region38: #{tpu_custom_call.1} parent=5 // pred_check_branch
        %214 = sbr.rel (%p211) target = $region40
      $region39: #{tpu_custom_call.1} parent=5 // pred_region
        %s215 = ssub.s32 %s16, 1
        // Predicated region
        $region41: #{tpu_custom_call.1} parent=39 // pred_check
          %p216 = pneg %p63
        $region42: #{tpu_custom_call.1} parent=39 // pred_check_branch
          %218 = sbr.rel (%p216) target = $region44
        $region43: #{tpu_custom_call.1} parent=39 // pred_region
          %219 = dma.done [#allocation5], 128
        $region44: #{tpu_custom_call.1} parent=39 // pred_fallthru
          _
        // Predicated region
        $region45: #{tpu_custom_call.1} parent=39 // pred_check
          %p220 = pneg %p84
        $region46: #{tpu_custom_call.1} parent=39 // pred_check_branch
          %222 = sbr.rel (%p220) target = $region48
        $region47: #{tpu_custom_call.1} parent=39 // pred_region
          %223 = dma.done [#allocation8], 512
        $region48: #{tpu_custom_call.1} parent=39 // pred_fallthru
          _
        %p224 = scmp.lt.s32.totalorder %s21, 1
        %s225 = scalar_select %p224, %s21, 1
        %s226 = smul.addr %s225, 2
        %s227 = smul.addr %s226, 4
        %s228 = scalar_lea.vmem %s0, %s227
        %p229 = pneg %p42
        %p230 = pneg %p39
        %p231 = pneg %p63
        %p232 = pneg %p60
        %p233 = pneg %p84
        %p234 = pneg %p81
        %p235 = pneg %p105
        %p236 = pneg %p102
        %p237 = pneg %p126
        %p238 = pneg %p123
        %p239 = pneg %p152
        %p240 = pneg %p149
        %s241 = sand.u32 %s139, 1
        %s242 = scalar_lea.sflag [#allocation6], %s241
        %s243 = sand.u32 %s139, 1
        %s244 = smul.addr %s243, 16
        %s245 = scalar_lea.vmem [#allocation9], %s244
        %p246 = scmp.lt.s32.totalorder %s21, 1
        %s247 = scalar_select %p246, %s21, 1
        %s248 = smul.addr %s247, 2
        %s249 = smul.addr %s248, 4
        %s250 = scalar_lea.vmem %s0, %s249
        %v251 = vld [vmem:[%s250] sm:$0xff]
        %252 = vst [vmem:[#allocation2 + $0x4] sm:$0xff] %v251
        %v253 = vld [vmem:[#allocation7] ss:$8 sm:$0x3]
        %vm254 = vcmp.ne.f32.partialorder %v253, 0.0
        %v255 = vld [vmem:[#allocation2] sm:$0xff]
        %v256 = vld [vmem:[#allocation2 + $0x8] sm:$0xf]
        %v257 = vsel %vm254, 1, 0
        %v258 = vlaneseq
        %v259 = vshrl.u32 %v258, 7
        %v260 = vsub.s32 0, %v259
        %v261 = vrot.slane %v257, %v260
        %v262 = vlaneseq
        %v263 = vshrl.u32 %v262, 7
        %v264 = vsub.s32 1, %v263
        %v265 = vrot.slane %v257, %v264
        %vm266 = vcmp.eq.s32.totalorder %v261, 1
        %vm267 = vcmp.eq.s32.totalorder %v265, 1
        %v270 = vcombine.high %v255, %v255
        %271 = vrot.lane.b32.xlu0 %v255, 17
        %v272 = vpop.permute.xlu0 %271
        %273 = vrot.lane.b32.xlu0 %v270, 17
        %v274 = vpop.permute.xlu0 %273
        %275 = vrot.lane.b32.xlu0 %v256, 17
        %v276 = vpop.permute.xlu0 %275
        %vm277 = vcmask 138240
        %v278 = vsel %vm277, %v272, %v274
        %v279 = vsel %vm277, %v274, %v276
        %v282 = vsel %vm266, %v278, 0.0
        %v283 = vsel %vm267, %v279, 0.0
        %284 = vst [vmem:[#allocation3] sm:$0xf] %v282
        %285 = vst [vmem:[#allocation3 + $0x8] sm:$0xf] %v283
        %s286 = scalar_lea.vmem [#allocation7], 1
        %v287 = vld [vmem:[%s286] ss:$8 sm:$0x3]
        %vm288 = vcmp.ne.f32.partialorder %v287, 0.0
        %v289 = vld [vmem:[#allocation2] sm:$0xff]
        %v290 = vld [vmem:[#allocation2 + $0x8] sm:$0xf]
        %v291 = vsel %vm288, 1, 0
        %v292 = vlaneseq
        %v293 = vshrl.u32 %v292, 7
        %v294 = vsub.s32 0, %v293
        %v295 = vrot.slane %v291, %v294
        %v296 = vlaneseq
        %v297 = vshrl.u32 %v296, 7
        %v298 = vsub.s32 1, %v297
        %v299 = vrot.slane %v291, %v298
        %vm300 = vcmp.eq.s32.totalorder %v295, 1
        %vm301 = vcmp.eq.s32.totalorder %v299, 1
        %v304 = vcombine.high %v289, %v289
        %305 = vrot.lane.b32.xlu0 %v289, 16
        %v306 = vpop.permute.xlu0 %305
        %307 = vrot.lane.b32.xlu0 %v304, 16
        %v308 = vpop.permute.xlu0 %307
        %309 = vrot.lane.b32.xlu0 %v290, 16
        %v310 = vpop.permute.xlu0 %309
        %vm311 = vcmask 130048
        %v312 = vsel %vm311, %v306, %v308
        %v313 = vsel %vm311, %v308, %v310
        %v316 = vsel %vm300, %v312, 0.0
        %v317 = vsel %vm301, %v313, 0.0
        %v320 = vrot.slane %v316, 4
        %v321 = vrot.slane %v317, 4
        %324 = vst [vmem:[#allocation3] sm:$0xf0] %v320
        %325 = vst [vmem:[#allocation3 + $0x8] sm:$0xf0] %v321
        %s326 = scalar_lea.vmem [#allocation7], 2
        %v327 = vld [vmem:[%s326] ss:$8 sm:$0x3]
        %vm328 = vcmp.ne.f32.partialorder %v327, 0.0
        %v329 = vld [vmem:[#allocation2] sm:$0xff]
        %v330 = vld [vmem:[#allocation2 + $0x8] sm:$0xf]
        %v331 = vsel %vm328, 1, 0
        %v332 = vlaneseq
        %v333 = vshrl.u32 %v332, 7
        %v334 = vsub.s32 0, %v333
        %v335 = vrot.slane %v331, %v334
        %v336 = vlaneseq
        %v337 = vshrl.u32 %v336, 7
        %v338 = vsub.s32 1, %v337
        %v339 = vrot.slane %v331, %v338
        %vm340 = vcmp.eq.s32.totalorder %v335, 1
        %vm341 = vcmp.eq.s32.totalorder %v339, 1
        %v344 = vcombine.high %v329, %v329
        %345 = vrot.lane.b32.xlu0 %v329, 15
        %v346 = vpop.permute.xlu0 %345
        %347 = vrot.lane.b32.xlu0 %v344, 15
        %v348 = vpop.permute.xlu0 %347
        %349 = vrot.lane.b32.xlu0 %v330, 15
        %v350 = vpop.permute.xlu0 %349
        %vm351 = vcmask 121856
        %v352 = vsel %vm351, %v346, %v348
        %v353 = vsel %vm351, %v348, %v350
        %v356 = vsel %vm340, %v352, 0.0
        %v357 = vsel %vm341, %v353, 0.0
        %358 = vst [vmem:[#allocation3 + $0x10] sm:$0xf] %v356
        %359 = vst [vmem:[#allocation3 + $0x18] sm:$0xf] %v357
        %s360 = scalar_lea.vmem [#allocation7], 3
        %v361 = vld [vmem:[%s360] ss:$8 sm:$0x3]
        %vm362 = vcmp.ne.f32.partialorder %v361, 0.0
        %v363 = vld [vmem:[#allocation2] sm:$0xff]
        %v364 = vld [vmem:[#allocation2 + $0x8] sm:$0xf]
        %v365 = vsel %vm362, 1, 0
        %v366 = vlaneseq
        %v367 = vshrl.u32 %v366, 7
        %v368 = vsub.s32 0, %v367
        %v369 = vrot.slane %v365, %v368
        %v370 = vlaneseq
        %v371 = vshrl.u32 %v370, 7
        %v372 = vsub.s32 1, %v371
        %v373 = vrot.slane %v365, %v372
        %vm374 = vcmp.eq.s32.totalorder %v369, 1
        %vm375 = vcmp.eq.s32.totalorder %v373, 1
        %v378 = vcombine.high %v363, %v363
        %379 = vrot.lane.b32.xlu0 %v363, 1
        %v380 = vpop.permute.xlu0 %379
        %381 = vrot.lane.b32.xlu0 %v378, 1
        %v382 = vpop.permute.xlu0 %381
        %383 = vrot.lane.b32.xlu0 %v364, 1
        %v384 = vpop.permute.xlu0 %383
        %vm385 = vcmask 7168
        %v386 = vsel %vm385, %v380, %v382
        %v387 = vsel %vm385, %v382, %v384
        %v390 = vsel %vm374, %v386, 0.0
        %v391 = vsel %vm375, %v387, 0.0
        %v394 = vrot.slane %v390, 4
        %v395 = vrot.slane %v391, 4
        %398 = vst [vmem:[#allocation3 + $0x10] sm:$0xf0] %v394
        %399 = vst [vmem:[#allocation3 + $0x18] sm:$0xf0] %v395
        %v400 = vld [vmem:[#allocation2 + $0x4] sm:$0xff]
        %v402 = vcombine.high %v400, %v400
        %404 = vst [vmem:[#allocation3 + $0x20] sm:$0xf] %v400
        %405 = vst [vmem:[#allocation3 + $0x28] sm:$0xf] %v402
        %s406 = scalar_lea.vmem [#allocation7], 5
        %v407 = vld [vmem:[%s406] ss:$8 sm:$0x3]
        %vm408 = vcmp.ne.f32.partialorder %v407, 0.0
        %v409 = vld [vmem:[#allocation2 + $0x4] sm:$0xff]
        %v410 = vld [vmem:[#allocation2 + $0xc] sm:$0xf]
        %v411 = vsel %vm408, 1, 0
        %v412 = vlaneseq
        %v413 = vshrl.u32 %v412, 7
        %v414 = vsub.s32 0, %v413
        %v415 = vrot.slane %v411, %v414
        %v416 = vlaneseq
        %v417 = vshrl.u32 %v416, 7
        %v418 = vsub.s32 1, %v417
        %v419 = vrot.slane %v411, %v418
        %vm420 = vcmp.eq.s32.totalorder %v415, 1
        %vm421 = vcmp.eq.s32.totalorder %v419, 1
        %v424 = vcombine.high %v409, %v409
        %425 = vrot.lane.b32.xlu0 %v409, 127
        %v426 = vpop.permute.xlu0 %425
        %427 = vrot.lane.b32.xlu0 %v424, 127
        %v428 = vpop.permute.xlu0 %427
        %429 = vrot.lane.b32.xlu0 %v410, 127
        %v430 = vpop.permute.xlu0 %429
        %vm431 = vcmask 1039360
        %v432 = vsel %vm431, %v426, %v428
        %v433 = vsel %vm431, %v428, %v430
        %v436 = vsel %vm420, %v432, 0.0
        %v437 = vsel %vm421, %v433, 0.0
        %v440 = vrot.slane %v436, 4
        %v441 = vrot.slane %v437, 4
        %444 = vst [vmem:[#allocation3 + $0x20] sm:$0xf0] %v440
        %445 = vst [vmem:[#allocation3 + $0x28] sm:$0xf0] %v441
        %s446 = scalar_lea.vmem [#allocation7], 6
        %v447 = vld [vmem:[%s446] ss:$8 sm:$0x3]
        %vm448 = vcmp.ne.f32.partialorder %v447, 0.0
        %v449 = vld [vmem:[#allocation2 + $0x4] sm:$0xff]
        %v450 = vld [vmem:[#allocation2 + $0xc] sm:$0xf]
        %v451 = vsel %vm448, 1, 0
        %v452 = vlaneseq
        %v453 = vshrl.u32 %v452, 7
        %v454 = vsub.s32 0, %v453
        %v455 = vrot.slane %v451, %v454
        %v456 = vlaneseq
        %v457 = vshrl.u32 %v456, 7
        %v458 = vsub.s32 1, %v457
        %v459 = vrot.slane %v451, %v458
        %vm460 = vcmp.eq.s32.totalorder %v455, 1
        %vm461 = vcmp.eq.s32.totalorder %v459, 1
        %v464 = vcombine.high %v449, %v449
        %465 = vrot.lane.b32.xlu0 %v449, 113
        %v466 = vpop.permute.xlu0 %465
        %467 = vrot.lane.b32.xlu0 %v464, 113
        %v468 = vpop.permute.xlu0 %467
        %469 = vrot.lane.b32.xlu0 %v450, 113
        %v470 = vpop.permute.xlu0 %469
        %vm471 = vcmask 924672
        %v472 = vsel %vm471, %v466, %v468
        %v473 = vsel %vm471, %v468, %v470
        %v476 = vsel %vm460, %v472, 0.0
        %v477 = vsel %vm461, %v473, 0.0
        %478 = vst [vmem:[#allocation3 + $0x30] sm:$0xf] %v476
        %479 = vst [vmem:[#allocation3 + $0x38] sm:$0xf] %v477
        %s480 = scalar_lea.vmem [#allocation7], 7
        %v481 = vld [vmem:[%s480] ss:$8 sm:$0x3]
        %vm482 = vcmp.ne.f32.partialorder %v481, 0.0
        %v483 = vld [vmem:[#allocation2 + $0x4] sm:$0xff]
        %v484 = vld [vmem:[#allocation2 + $0xc] sm:$0xf]
        %v485 = vsel %vm482, 1, 0
        %v486 = vlaneseq
        %v487 = vshrl.u32 %v486, 7
        %v488 = vsub.s32 0, %v487
        %v489 = vrot.slane %v485, %v488
        %v490 = vlaneseq
        %v491 = vshrl.u32 %v490, 7
        %v492 = vsub.s32 1, %v491
        %v493 = vrot.slane %v485, %v492
        %vm494 = vcmp.eq.s32.totalorder %v489, 1
        %vm495 = vcmp.eq.s32.totalorder %v493, 1
        %v498 = vcombine.high %v483, %v483
        %499 = vrot.lane.b32.xlu0 %v483, 112
        %v500 = vpop.permute.xlu0 %499
        %501 = vrot.lane.b32.xlu0 %v498, 112
        %v502 = vpop.permute.xlu0 %501
        %503 = vrot.lane.b32.xlu0 %v484, 112
        %v504 = vpop.permute.xlu0 %503
        %vm505 = vcmask 916480
        %v506 = vsel %vm505, %v500, %v502
        %v507 = vsel %vm505, %v502, %v504
        %v510 = vsel %vm494, %v506, 0.0
        %v511 = vsel %vm495, %v507, 0.0
        %v514 = vrot.slane %v510, 4
        %v515 = vrot.slane %v511, 4
        %518 = vst [vmem:[#allocation3 + $0x30] sm:$0xf0] %v514
        %519 = vst [vmem:[#allocation3 + $0x38] sm:$0xf0] %v515
        %s520 = scalar_lea.vmem [#allocation7], 16
        %v521 = vld [vmem:[%s520] ss:$8 sm:$0x3]
        %vm522 = vcmp.ne.f32.partialorder %v521, 0.0
        %v523 = vld [vmem:[#allocation2 + $0x4] sm:$0xff]
        %v524 = vld [vmem:[#allocation2 + $0xc] sm:$0xf]
        %v525 = vsel %vm522, 1, 0
        %v526 = vlaneseq
        %v527 = vshrl.u32 %v526, 7
        %v528 = vsub.s32 0, %v527
        %v529 = vrot.slane %v525, %v528
        %v530 = vlaneseq
        %v531 = vshrl.u32 %v530, 7
        %v532 = vsub.s32 1, %v531
        %v533 = vrot.slane %v525, %v532
        %vm534 = vcmp.eq.s32.totalorder %v529, 1
        %vm535 = vcmp.eq.s32.totalorder %v533, 1
        %v538 = vcombine.high %v523, %v523
        %539 = vrot.lane.b32.xlu0 %v523, 111
        %v540 = vpop.permute.xlu0 %539
        %541 = vrot.lane.b32.xlu0 %v538, 111
        %v542 = vpop.permute.xlu0 %541
        %543 = vrot.lane.b32.xlu0 %v524, 111
        %v544 = vpop.permute.xlu0 %543
        %vm545 = vcmask 908288
        %v546 = vsel %vm545, %v540, %v542
        %v547 = vsel %vm545, %v542, %v544
        %v550 = vsel %vm534, %v546, 0.0
        %v551 = vsel %vm535, %v547, 0.0
        %552 = vst [vmem:[#allocation3 + $0x40] sm:$0xf] %v550
        %553 = vst [vmem:[#allocation3 + $0x48] sm:$0xf] %v551
        %v554 = vld [vmem:[#allocation4] sm:$0xff]
        %v555 = vld [vmem:[#allocation3] sm:$0xff]
        %v556 = vld [vmem:[#allocation3 + $0x8] sm:$0xff]
        %v557 = vld [vmem:[#allocation3 + $0x10] sm:$0xff]
        %v558 = vld [vmem:[#allocation3 + $0x18] sm:$0xff]
        %v559 = vld [vmem:[#allocation3 + $0x20] sm:$0xff]
        %v560 = vld [vmem:[#allocation3 + $0x28] sm:$0xff]
        %v561 = vld [vmem:[#allocation3 + $0x30] sm:$0xff]
        %v562 = vld [vmem:[#allocation3 + $0x38] sm:$0xff]
        %v563 = vld [vmem:[#allocation3 + $0x40] sm:$0xf]
        %v564 = vld [vmem:[#allocation3 + $0x48] sm:$0xf]
        %vm565 = vcmask 293888
        %v567 = vsel %vm565, %v554, 0
        %vm569 = vcmask 1043456
        %v571 = vsel %vm569, %v563, 0
        %v574 = vsel %vm569, %v564, 0
        %576 = vmatprep.subr.mxu0 0.0
        %577 = vmatpush1.msra.mxu0 0.0
        %578 = vmatprep.subr.mxu0 0.0
        %579 = vmatpush1.msra.mxu0 0.0
        %580 = vmatprep.subr.mxu0 0.0
        %581 = vmatpush1.msra.mxu0 0.0
        %582 = vmatprep.subr.mxu0 0.0
        %583 = vmatpush1.msra.mxu0 0.0
        %584 = vmatprep.subr.mxu0 0.0
        %585 = vmatpush1.msra.mxu0 0.0
        %586 = vmatprep.subr.mxu0 0.0
        %587 = vmatpush1.msra.mxu0 0.0
        %588 = vmatprep.subr.mxu0 0.0
        %589 = vmatpush1.msra.mxu0 0.0
        %590 = vmatprep.subr.mxu0 0.0
        %591 = vmatpush1.msra.mxu0 0.0
        %592 = vmatprep.subr.mxu0 0.0
        %593 = vmatpush1.msra.mxu0 0.0
        %594 = vmatprep.subr.mxu0 0.0
        %595 = vmatpush1.msra.mxu0 0.0
        %596 = vmatprep.subr.mxu0 0.0
        %597 = vmatpush1.msra.mxu0 0.0
        %598 = vmatprep.subr.mxu0 %v574
        %599 = vmatpush1.msra.mxu0 %v571
        %600 = vmatprep.subr.mxu0 %v562
        %601 = vmatpush1.msra.mxu0 %v561
        %602 = vmatprep.subr.mxu0 %v560
        %603 = vmatpush1.msra.mxu0 %v559
        %604 = vmatprep.subr.mxu0 %v558
        %605 = vmatpush1.msra.mxu0 %v557
        %606 = vmatprep.subr.mxu0 %v556
        %607 = vmatpush1.msra.mxu0 %v555
        %608 = vmatprep.subr.mxu0 0.0
        %609 = vmatpush2.msra.mxu0 0.0
        %610 = vmatprep.subr.mxu0 0.0
        %611 = vmatpush2.msra.mxu0 0.0
        %612 = vmatprep.subr.mxu0 0.0
        %613 = vmatpush2.msra.mxu0 0.0
        %614 = vmatprep.subr.mxu0 0.0
        %615 = vmatpush2.msra.mxu0 0.0
        %616 = vmatprep.subr.mxu0 0.0
        %617 = vmatpush2.msra.mxu0 0.0
        %618 = vmatprep.subr.mxu0 0.0
        %619 = vmatpush2.msra.mxu0 0.0
        %620 = vmatprep.subr.mxu0 0.0
        %621 = vmatpush2.msra.mxu0 0.0
        %622 = vmatprep.subr.mxu0 0.0
        %623 = vmatpush2.msra.mxu0 0.0
        %624 = vmatprep.subr.mxu0 0.0
        %625 = vmatpush2.msra.mxu0 0.0
        %626 = vmatprep.subr.mxu0 0.0
        %627 = vmatpush2.msra.mxu0 0.0
        %628 = vmatprep.subr.mxu0 0.0
        %629 = vmatpush2.msra.mxu0 0.0
        %630 = vmatprep.subr.mxu0 0.0
        %631 = vmatpush2.msra.mxu0 0.0
        %632 = vmatprep.subr.mxu0 0.0
        %633 = vmatpush2.msra.mxu0 0.0
        %634 = vmatprep.subr.mxu0 0.0
        %635 = vmatpush2.msra.mxu0 0.0
        %636 = vmatprep.subr.mxu0 0.0
        %637 = vmatpush2.msra.mxu0 0.0
        %638 = vmatprep.subr.mxu0 0.0
        %639 = vmatpush2.msra.mxu0 0.0
        %640 = vmatprep.mubr.f32.mxu0 0.0
        %641 = vmatmul.mubr.f32.gmra.mxu0 %v567
        %v642 = vpop.f32.mrf.mxu0
        %v643 = vadd.f32 0.0, %v642
        %v644 = vpop.f32.mrf.mxu0
        %v645 = vadd.f32 0.0, %v644
        %646 = vdwg.mxu0
        %v647 = vld [vmem:[%s3] sm:$0xff]
        %649 = vset.pattern.permute.xlu0 0
        %650 = vperm.xlu0 %649, %v647
        %v651 = vpop.permute.xlu0 %650
        %v653 = vmul.f32 %v643, %v651
        %v654 = vmul.f32 %v645, %v651
        %v655 = vld [vmem:[%s4] sm:$0xff]
        %657 = vset.pattern.permute.xlu0 0
        %658 = vperm.xlu0 %657, %v655
        %v659 = vpop.permute.xlu0 %658
        %v661 = vadd.f32 %v653, %v659
        %v662 = vadd.f32 %v654, %v659
        %663 = vst [vmem:[%s245] sm:$0xff] %v661
        %664 = vst [vmem:[%s245 + $0x8] sm:$0xff] %v662
        %s665 = sand.u32 %s139, 1
        %s666 = scalar_lea.sflag [#allocation6], %s665
        %s667 = sand.u32 %s139, 1
        %s668 = smul.addr %s667, 16
        %s669 = scalar_lea.vmem [#allocation9], %s668
        // Predicated region
        $region49: #{tpu_custom_call.1} parent=39 // pred_check
          %p670 = pneg %p149
        $region50: #{tpu_custom_call.1} parent=39 // pred_check_branch
          %672 = sbr.rel (%p670) target = $region52
        $region51: #{tpu_custom_call.1} parent=39 // pred_region
          %s674 = ssub.s32 256, 256
          %675 = vsyncadd %s666, %s674
          %s676 = smul.addr %s21, 2
          %s677 = smul.addr %s676, 128
          %s678 = scalar_lea.hbm %s5, %s677
          %s680 = sshll.u32 %s669, 4
          %s681 = int_to_ptr.vmem [resolvable:$true] %s680
          %683 = dma.vmem_to_hbm [thread:$0]  %s681, 256, %s678, %s666
        $region52: #{tpu_custom_call.1} parent=39 // pred_fallthru
          _
      $region40: #{tpu_custom_call.1} parent=5 // pred_fallthru
        _
      %p684 = scmp.le.s32.totalorder 2, %s16
      // Predicated region
      $region53: #{tpu_custom_call.1} parent=5 // pred_check
        %p685 = pneg %p684
      $region54: #{tpu_custom_call.1} parent=5 // pred_check_branch
        %687 = sbr.rel (%p685) target = $region56
      $region55: #{tpu_custom_call.1} parent=5 // pred_region
        %s688 = ssub.s32 %s16, 2
        // Predicated region
        $region57: #{tpu_custom_call.1} parent=55 // pred_check
          %p689 = pneg %p155
        $region58: #{tpu_custom_call.1} parent=55 // pred_check_branch
          %691 = sbr.rel (%p689) target = $region60
        $region59: #{tpu_custom_call.1} parent=55 // pred_region
          %s692 = sand.u32 %s140, 1
          %s693 = scalar_lea.sflag [#allocation6], %s692
          %s694 = sand.u32 %s140, 1
          %s695 = smul.addr %s694, 16
          %s696 = scalar_lea.vmem [#allocation9], %s695
          %697 = dma.done %s693, 256
        $region60: #{tpu_custom_call.1} parent=55 // pred_fallthru
          _
      $region56: #{tpu_custom_call.1} parent=5 // pred_fallthru
        _
    $region6: #{tpu_custom_call.1} parent=1 // loop_footer
      %s20 = sadd.s32 1, %s16
    $region7: #{tpu_custom_call.1} parent=1 // loop_footer_branch
      %15 = sbr.rel target = $region3
    $region8: #{tpu_custom_call.1} parent=1 // loop_exit
      _
    %698 = vsyncpa [#allocation5], 1
    %s699 = scalar_lea.sflag [#allocation5], 1
    %700 = vsyncpa %s699, 1
    %701 = vsyncpa [#allocation8], 1
    %702 = vsyncpa [#allocation6], 1
    %s703 = scalar_lea.sflag [#allocation6], 1
    %704 = vsyncpa %s703, 1

</llo_original>
